<compile_context>
chip_gen: v5e
topology: v5e:2x2
jax: 0.10.0
libtpu: 0.0.40
codegen_flags: <defaults>
</compile_context>

<pallas_src>
import functools

import jax
import jax.numpy as jnp
import numpy as np
from jax.experimental import pallas as pl
from jax.experimental.pallas import tpu as pltpu


# ---------------------------------------------------------------------------
# In-kernel helpers
# ---------------------------------------------------------------------------
def _softmax_last(scores):
    """Numerically stable softmax over the last (lane) axis. Exact divide."""
    m = jnp.max(scores, axis=-1, keepdims=True)
    e = jnp.exp(scores - m)
    return e / jnp.sum(e, axis=-1, keepdims=True)


def _finish(enc_f32, scores, wts_ref, ctx_ref):
    """Softmax over L, then fused attention-apply: context = weights @ enc."""
    w = _softmax_last(scores)                                # (B, L) f32
    # enc already resident in VMEM -> context without an HBM roundtrip.
    ctx = jnp.sum(w[:, :, None] * enc_f32, axis=1)           # (B, H) f32
    wts_ref[...] = w.astype(wts_ref.dtype)
    ctx_ref[...] = ctx.astype(ctx_ref.dtype)


# ---------------------------------------------------------------------------
# Kernels: single invocation, whole batch resident in VMEM.
#   hidden_ref: (B, H)   enc_ref: (B, L, H)
#   wts_ref:    (B, L)   ctx_ref: (B, H)
# ---------------------------------------------------------------------------
def dot_kernel(hidden_ref, enc_ref, wts_ref, ctx_ref):
    h = hidden_ref[...].astype(jnp.float32)                  # (B, H)
    enc = enc_ref[...].astype(jnp.float32)                   # (B, L, H)
    # Per-batch single-query contraction over H: VPU multiply + lane reduce
    # (a 1-row-per-batch MXU push would be pure fill/drain latency).
    scores = jnp.sum(h[:, None, :] * enc, axis=-1)           # (B, L)
    _finish(enc, scores, wts_ref, ctx_ref)


def general_kernel(hidden_ref, enc_ref, w_ref, wts_ref, ctx_ref):
    # Reordered general score (bias dropped: softmax is shift-invariant):
    #   sum_o h[o] * (sum_i W[o,i] enc[l,i])  =  sum_i (h @ W)[i] * enc[l,i]
    # W is the raw torch (out, in) Linear weight, so h @ W needs no transpose.
    enc = enc_ref[...].astype(jnp.float32)                   # (B, L, H)
    hp = jnp.dot(hidden_ref[...], w_ref[...],
                 preferred_element_type=jnp.float32)          # (B, H) one MXU matmul
    scores = jnp.sum(hp[:, None, :] * enc, axis=-1)           # (B, L)
    _finish(enc, scores, wts_ref, ctx_ref)


def concat_kernel(hidden_ref, enc_ref, w_hid_t_ref, w_enc_t_ref, b_ref, v_ref,
                  wts_ref, ctx_ref):
    # concat score: energy = tanh(cat([hidden, enc], -1) @ W^T + b); score = v . energy
    # The (H, 2H) weight is pre-split AND pre-transposed in the wrapper, so both
    # projections are plain (rows, H) @ (H, H) MXU matmuls over the whole batch.
    enc = enc_ref[...]                                        # (B, L, H)
    B, L, H = enc.shape
    hid_part = jnp.dot(hidden_ref[...], w_hid_t_ref[...],
                       preferred_element_type=jnp.float32) + b_ref[...]     # (B, H)
    enc_part = jnp.dot(enc.reshape(B * L, H), w_enc_t_ref[...],
                       preferred_element_type=jnp.float32).reshape(B, L, H)  # (B, L, H)
    energy = jnp.tanh(hid_part[:, None, :] + enc_part)        # (B, L, H) f32 (EUP)
    scores = jnp.sum(energy * v_ref[...], axis=-1)             # (B, L)
    _finish(enc.astype(jnp.float32), scores, wts_ref, ctx_ref)


_KERNELS = {"dot": dot_kernel, "general": general_kernel, "concat": concat_kernel}


# ---------------------------------------------------------------------------
# pallas_call wrapper: one step, everything in VMEM, lane/sublane-dense output.
# ---------------------------------------------------------------------------
def _attn_pallas(kernel, hidden_bh, enc_blh, *weights):
    B, H = hidden_bh.shape
    L = enc_blh.shape[1]
    vmem = pl.BlockSpec(memory_space=pltpu.MemorySpace.VMEM)
    out_dtype = hidden_bh.dtype
    return pl.pallas_call(
        kernel,
        out_shape=(jax.ShapeDtypeStruct((B, L), out_dtype),   # attn weights
                   jax.ShapeDtypeStruct((B, H), out_dtype)),  # fused context
        in_specs=[vmem] * (2 + len(weights)),
        out_specs=(vmem, vmem),
        compiler_params=pltpu.CompilerParams(
            vmem_limit_bytes=32 * 1024 * 1024),
    )(hidden_bh, enc_blh, *weights)


# ---------------------------------------------------------------------------
# Hoisted (once-per-decode-sequence) preparation — review item: do NOT redo the
# (L,B,H)->(B,L,H) transpose or the concat weight split per decode step.
# ---------------------------------------------------------------------------
def prepare_encoder_outputs(encoder_outputs, dtype=None):
    enc = jnp.transpose(encoder_outputs, (1, 0, 2))            # (B, L, H)
    return enc if dtype is None else enc.astype(dtype)


def prepare_attn_params(method, params, hidden_size, dtype=None):
    cast = (lambda x: x if dtype is None else x.astype(dtype))
    H = hidden_size
    if method == "dot":
        return ()
    if method == "general":
        # Raw torch (out, in) Linear weight; bias intentionally dropped
        # (softmax shift-invariance) so it is never DMA'd.
        return (cast(params["attn_w"]),)
    if method == "concat":
        w = params["attn_w"]                                   # (H, 2H)
        return (cast(w[:, :H].T),                              # (H, H) hidden half
                cast(w[:, H:].T),                              # (H, H) enc half
                cast(params["attn_b"].reshape(1, H)),
                cast(params["v"].reshape(1, H)))
    raise ValueError(f"{method} is not an appropriate attention method.")


# ---------------------------------------------------------------------------
# Per-decode-step entry point
# ---------------------------------------------------------------------------
@functools.partial(jax.jit, static_argnames=("method",))
def attn_step(method, hidden, enc_blh, weights):
    """One decode step: hidden (1,B,H), prepared enc (B,L,H), prepared weights.

    Returns (attn_weights (B,1,L), context (B,1,H)) — the softmax weights of
    the original Attn module plus the fused attention-apply bmm.
    """
    _, B, H = hidden.shape
    hidden_bh = hidden.reshape(B, H).astype(enc_blh.dtype)     # free squeeze
    wts, ctx = _attn_pallas(_KERNELS[method], hidden_bh, enc_blh, *weights)
    return wts[:, None, :], ctx[:, None, :]                    # free reshapes


# ---------------------------------------------------------------------------
# Pure-JAX reference (mirrors the PyTorch code) for validation
# ---------------------------------------------------------------------------
def attn_reference(method, hidden, encoder_outputs, params):
    if method == "dot":
        energies = jnp.sum(hidden * encoder_outputs, axis=2)               # (L, B)
    elif method == "general":
        energy = encoder_outputs @ params["attn_w"].T + params["attn_b"]
        energies = jnp.sum(hidden * energy, axis=2)
    elif method == "concat":
        hid_exp = jnp.broadcast_to(hidden, encoder_outputs.shape)
        cat = jnp.concatenate([hid_exp, encoder_outputs], axis=2)
        energy = jnp.tanh(cat @ params["attn_w"].T + params["attn_b"])
        energies = jnp.sum(params["v"] * energy, axis=2)
    energies = energies.T                                                   # (B, L)
    weights = jax.nn.softmax(energies, axis=1)[:, None, :]                  # (B, 1, L)
    context = jnp.matmul(weights, jnp.transpose(encoder_outputs, (1, 0, 2)))  # (B, 1, H)
    return weights, context


def _check(out, ref, rtol, atol):
    np.testing.assert_allclose(np.asarray(out.astype(jnp.float32)),
                               np.asarray(ref.astype(jnp.float32)),
                               rtol=rtol, atol=atol)


# ---------------------------------------------------------------------------
if __name__ == "__main__":
    B, L, H = 2, 8, 32   # small shapes consistent with the module's forward
    key = jax.random.PRNGKey(0)
    k_hid, k_enc, k_wg, k_bg, k_wc, k_bc, k_v = jax.random.split(key, 7)

    hidden = jax.random.normal(k_hid, (1, B, H), dtype=jnp.float32)
    encoder_outputs = jax.random.normal(k_enc, (L, B, H), dtype=jnp.float32)

    params_by_method = {
        "dot": {},
        "general": {
            "attn_w": 0.1 * jax.random.normal(k_wg, (H, H), jnp.float32),
            "attn_b": 0.1 * jax.random.normal(k_bg, (H,), jnp.float32),
        },
        "concat": {
            "attn_w": 0.1 * jax.random.normal(k_wc, (H, 2 * H), jnp.float32),
            "attn_b": 0.1 * jax.random.normal(k_bc, (H,), jnp.float32),
            "v": 0.1 * jax.random.normal(k_v, (H,), jnp.float32),
        },
    }

    for method in ("dot", "general", "concat"):
        params = params_by_method[method]
        ref_w, ref_ctx = attn_reference(method, hidden, encoder_outputs, params)

        # --- f32 path: hoisted prep once, then one fused attention step -----
        enc_blh = prepare_encoder_outputs(encoder_outputs)
        weights = prepare_attn_params(method, params, H)
        wts, ctx = attn_step(method, hidden, enc_blh, weights)
        (wts, ctx) = jax.block_until_ready((wts, ctx))
        assert wts.shape == (B, 1, L), wts.shape
        assert ctx.shape == (B, 1, H), ctx.shape
        _check(wts, ref_w, rtol=2e-3, atol=2e-3)
        _check(ctx, ref_ctx, rtol=5e-3, atol=5e-3)
        # Exact-divide softmax: rows sum to 1 at fp32 rounding level.
        np.testing.assert_allclose(np.asarray(wts).sum(axis=-1),
                                   np.ones((B, 1)), rtol=1e-5, atol=1e-5)

        # --- bf16 storage path (halves enc/weight DMA bytes, bf16 MXU) ------
        enc_bf16 = prepare_encoder_outputs(encoder_outputs, jnp.bfloat16)
        weights_bf16 = prepare_attn_params(method, params, H, jnp.bfloat16)
        wts16, ctx16 = attn_step(method, hidden, enc_bf16, weights_bf16)
        (wts16, ctx16) = jax.block_until_ready((wts16, ctx16))
        assert wts16.shape == (B, 1, L) and ctx16.shape == (B, 1, H)
        _check(wts16, ref_w, rtol=5e-2, atol=5e-2)
        _check(ctx16, ref_ctx, rtol=5e-2, atol=5e-2)

    print("KERNEL_OK")
</pallas_src>

<mosaic_0001>
module attributes {stable_mosaic.version = 11 : i64} {
  func.func @dot_kernel(%arg0: memref<2x32xf32, #tpu.memory_space<vmem>>, %arg1: memref<2x8x32xf32, #tpu.memory_space<vmem>>, %arg2: memref<2x8xf32, #tpu.memory_space<vmem>>, %arg3: memref<2x32xf32, #tpu.memory_space<vmem>>) attributes {dimension_semantics = [], scalar_prefetch = 0 : i64, scratch_operands = 0 : i64, tpu.core_type = #tpu.core_type<tc>} {
    %c0 = arith.constant 0 : index
    %c0_0 = arith.constant 0 : index
    %0 = vector.load %arg0[%c0, %c0_0] : memref<2x32xf32, #tpu.memory_space<vmem>>, vector<2x32xf32>
    %c0_1 = arith.constant 0 : index
    %c0_2 = arith.constant 0 : index
    %c0_3 = arith.constant 0 : index
    %1 = vector.load %arg1[%c0_1, %c0_2, %c0_3] : memref<2x8x32xf32, #tpu.memory_space<vmem>>, vector<2x8x32xf32>
    %2 = vector.shape_cast %0 : vector<2x32xf32> to vector<2x1x32xf32>
    %3 = vector.broadcast %2 : vector<2x1x32xf32> to vector<2x8x32xf32>
    %4 = arith.mulf %3, %1 : vector<2x8x32xf32>
    %cst = arith.constant dense<0.000000e+00> : vector<2x8xf32>
    %5 = vector.multi_reduction <add>, %4, %cst [2] : vector<2x8x32xf32> to vector<2x8xf32>
    %cst_4 = arith.constant dense<0xFF800000> : vector<2xf32>
    %6 = vector.multi_reduction <maximumf>, %5, %cst_4 [1] : vector<2x8xf32> to vector<2xf32>
    %7 = vector.shape_cast %6 : vector<2xf32> to vector<2x1xf32>
    %8 = vector.broadcast %7 : vector<2x1xf32> to vector<2x8xf32>
    %9 = arith.subf %5, %8 : vector<2x8xf32>
    %10 = math.exp %9 : vector<2x8xf32>
    %cst_5 = arith.constant dense<0.000000e+00> : vector<2xf32>
    %11 = vector.multi_reduction <add>, %10, %cst_5 [1] : vector<2x8xf32> to vector<2xf32>
    %12 = vector.shape_cast %11 : vector<2xf32> to vector<2x1xf32>
    %13 = vector.broadcast %12 : vector<2x1xf32> to vector<2x8xf32>
    %14 = arith.divf %10, %13 : vector<2x8xf32>
    %15 = vector.shape_cast %14 : vector<2x8xf32> to vector<2x8x1xf32>
    %16 = vector.broadcast %15 : vector<2x8x1xf32> to vector<2x8x32xf32>
    %17 = arith.mulf %16, %1 : vector<2x8x32xf32>
    %cst_6 = arith.constant dense<0.000000e+00> : vector<2x32xf32>
    %18 = vector.multi_reduction <add>, %17, %cst_6 [1] : vector<2x8x32xf32> to vector<2x32xf32>
    %c0_7 = arith.constant 0 : index
    %c0_8 = arith.constant 0 : index
    %19 = vector.load %arg2[%c0_7, %c0_8] : memref<2x8xf32, #tpu.memory_space<vmem>>, vector<2x8xf32>
    tpu.vector_store %arg2[%c0_7, %c0_8], %14 {strides = array<i32>} : memref<2x8xf32, #tpu.memory_space<vmem>>, vector<2x8xf32>,
    %c0_9 = arith.constant 0 : index
    %c0_10 = arith.constant 0 : index
    %20 = vector.load %arg3[%c0_9, %c0_10] : memref<2x32xf32, #tpu.memory_space<vmem>>, vector<2x32xf32>
    tpu.vector_store %arg3[%c0_9, %c0_10], %18 {strides = array<i32>} : memref<2x32xf32, #tpu.memory_space<vmem>>, vector<2x32xf32>,
    return
  }
}

</mosaic_0001>

<llo_original>
// kernel: attn_step.1
$region0: #{attn_step.1}
  #allocation0 [shape = 'u32[]', space=smem, size = 0x4, offset = 0x4, fixed_abs, tag = 'smem constant byte address 0x4 - core index']
  #allocation1 [shape = 'u32[72,128]{1,0:T(1,128)}', space=vmem, size = 0x9000, scoped, tag = 'internal scratch']
  %s0 = inlined_call_operand.hbm [shape: f32[2,32], index: 0, kind: input, shape index: {}]
  %s1 = inlined_call_operand.hbm [shape: f32[2,8,32], index: 1, kind: input, shape index: {}]
  %s2 = inlined_call_operand.hbm [shape: f32[2,8], index: 2, kind: output, shape index: {0}]
  %s3 = inlined_call_operand.hbm [shape: f32[2,32], index: 3, kind: output, shape index: {1}]
  %4 = xla_tuple %s2, %s3
  %s5 = sld [smem:[#allocation0]]
  $region34: #{attn_step.1} parent=0
    _
  %s7 = ssub.s32 1, %s5
  %s8 = scalar_select 0, %s7, %s5
  $region1: #{attn_step.1} parent=0
    #allocation2 [shape = 'u8[1024]{0}', space=vmem, size = 0x400, scoped, tag = 'input window, operand 0, single buffered']
    #allocation3 [shape = 's32[1]{0}', space=sflag, size = 0x4, scoped, tag = 'scoped memory for attn_step.1']
    #allocation4 [shape = 's32[1]{0}', space=sflag, size = 0x4, scoped, tag = 'scoped memory for attn_step.1']
    #allocation5 [shape = 'u8[8192]{0}', space=vmem, size = 0x2000, scoped, tag = 'input window, operand 1, single buffered']
    #allocation6 [shape = 's32[1]{0}', space=sflag, size = 0x4, scoped, tag = 'scoped memory for attn_step.1']
    #allocation7 [shape = 'u8[1024]{0}', space=vmem, size = 0x400, scoped, tag = 'output window, operand 0, single buffered']
    #allocation8 [shape = 'u8[1024]{0}', space=vmem, size = 0x400, scoped, tag = 'output window, operand 1, single buffered']
    #allocation9 [shape = 's32[1]{0}', space=sflag, size = 0x4, scoped, tag = 'scoped memory for attn_step.1']
    %9 = vsyncpa [#allocation3], 0
    %10 = vsyncpa [#allocation6], 0
    %11 = vsyncpa [#allocation4], 0
    %12 = vsyncpa [#allocation9], 0
    // Predicated region
    $region2: #{attn_step.1} parent=1 // pred_check
      _
    $region3: #{attn_step.1} parent=1 // pred_check_branch
      %14 = sbr.rel (0) target = $region5
    $region4: #{attn_step.1} parent=1 // pred_region
      %16 = vsyncadd [#allocation3], 0
      %s18 = sshll.u32 %s0, 4
      %s19 = int_to_ptr.hbm [resolvable:$true] %s18
      %s20 = sshll.u32 [#allocation2], 4
      %s21 = int_to_ptr.vmem [resolvable:$true] %s20
      %23 = dma.hbm_to_vmem [thread:$0]  %s19, 32, %s21, [#allocation3]
    $region5: #{attn_step.1} parent=1 // pred_fallthru
      _
    // Predicated region
    $region6: #{attn_step.1} parent=1 // pred_check
      _
    $region7: #{attn_step.1} parent=1 // pred_check_branch
      %25 = sbr.rel (0) target = $region9
    $region8: #{attn_step.1} parent=1 // pred_region
      %27 = vsyncadd [#allocation6], 0
      %s28 = sshll.u32 %s1, 4
      %s29 = int_to_ptr.hbm [resolvable:$true] %s28
      %s30 = sshll.u32 [#allocation5], 4
      %s31 = int_to_ptr.vmem [resolvable:$true] %s30
      %36 = dma.hbm_to_vmem [thread:$0]  %s29, 256, %s31, [#allocation6], 128, 128, 8
    $region9: #{attn_step.1} parent=1 // pred_fallthru
      _
    // Predicated region
    $region10: #{attn_step.1} parent=1 // pred_check
      _
    $region11: #{attn_step.1} parent=1 // pred_check_branch
      %38 = sbr.rel (0) target = $region13
    $region12: #{attn_step.1} parent=1 // pred_region
      %40 = dma.done [#allocation3], 32
    $region13: #{attn_step.1} parent=1 // pred_fallthru
      _
    // Predicated region
    $region14: #{attn_step.1} parent=1 // pred_check
      _
    $region15: #{attn_step.1} parent=1 // pred_check_branch
      %42 = sbr.rel (0) target = $region17
    $region16: #{attn_step.1} parent=1 // pred_region
      %44 = dma.done [#allocation6], 256
    $region17: #{attn_step.1} parent=1 // pred_fallthru
      _
    %v45 = vld [vmem:[#allocation2] sm:$0x3]
    %v46 = vld [vmem:[#allocation5] sm:$0xff]
    %v47 = vld [vmem:[#allocation5 + $0x8] sm:$0xff]
    %v49 = vrot.slane %v45, 1
    %v50 = vperm.slane %v45, 0
    %v51 = vperm.slane %v49, 0
    %v54 = vmul.f32 %v50, %v46
    %v55 = vmul.f32 %v51, %v47
    %vm56 = vcmask 261120
    %v57 = vsel %vm56, %v54, 0.0
    %58 = vadd.xlane.f32.xlu0 %v57
    %v59 = vpop.xlane.xlu0 %58
    %v60 = vsel %vm56, %v55, 0.0
    %61 = vadd.xlane.f32.xlu0 %v60
    %v62 = vpop.xlane.xlu0 %61
    %v65 = vlaneseq
    %v66 = vand.u32 %v65, 127
    %v67 = vperm.slane %v59, %v66
    %v68 = vperm.slane %v62, %v66
    %vm69 = vcmask 1041409
    %v70 = vsel %vm69, %v68, %v67
    %vm72 = vcmask 58368
    %v73 = vsel %vm72, %v70, -inf
    %74 = vmax.xlane.f32.xlu0 %v73
    %v75 = vpop.xlane.xlu0 %74
    %v77 = vperm.slane %v75, 0
    %v78 = vperm.slane %v75, 1
    %v81 = vsub.f32 %v59, %v77
    %v82 = vsub.f32 %v62, %v78
    %v83 = vmul.f32 %v81, 1.442695
    %v84 = vpow.pop %v83
    %v85 = vmul.f32 %v82, 1.442695
    %v86 = vpow.pop %v85
    %89 = vset.pattern.permute.xlu0 0
    %90 = vperm.xlu0 %89, %v84
    %v91 = vpop.permute.xlu0 %90
    %92 = vset.pattern.permute.xlu0 0
    %93 = vperm.xlu0 %92, %v86
    %v94 = vpop.permute.xlu0 %93
    %v95 = vperm.slane %v91, %v66
    %v96 = vperm.slane %v94, %v66
    %v97 = vsel %vm69, %v96, %v95
    %v99 = vsel %vm72, %v97, 0.0
    %100 = vadd.xlane.f32.xlu0 %v99
    %v101 = vpop.xlane.xlu0 %100
    %v103 = vperm.slane %v101, 0
    %v104 = vperm.slane %v101, 1
    %v107 = vrcp.pop %v103
    %v108 = vmul.f32 %v103, %v107
    %v109 = vsub.f32 1.0, %v108
    %v110 = vmul.f32 %v107, %v109
    %v111 = vadd.f32 %v107, %v110
    %vm112 = vweird.f32 %v103
    %vm113 = vweird.f32 %v107
    %vm114 = vmor %vm112, %vm113
    %v115 = vsel %vm114, %v107, %v111
    %v116 = vand.u32 2147483647, %v103
    %vm117 = vcmp.eq.f32.partialorder %v116, 8.507059e+37
    %v118 = vand.u32 %v103, 2147483648
    %v119 = vor.u32 1.1754944e-38, %v118
    %v120 = vsel %vm117, %v119, %v115
    %v121 = vmul.f32 %v84, %v120
    %v122 = vrcp.pop %v104
    %v123 = vmul.f32 %v104, %v122
    %v124 = vsub.f32 1.0, %v123
    %v125 = vmul.f32 %v122, %v124
    %v126 = vadd.f32 %v122, %v125
    %vm127 = vweird.f32 %v104
    %vm128 = vweird.f32 %v122
    %vm129 = vmor %vm127, %vm128
    %v130 = vsel %vm129, %v122, %v126
    %v131 = vand.u32 2147483647, %v104
    %vm132 = vcmp.eq.f32.partialorder %v131, 8.507059e+37
    %v133 = vand.u32 %v104, 2147483648
    %v134 = vor.u32 1.1754944e-38, %v133
    %v135 = vsel %vm132, %v134, %v130
    %v136 = vmul.f32 %v86, %v135
    %138 = vset.pattern.permute.xlu0 0
    %139 = vperm.xlu0 %138, %v121
    %v140 = vpop.permute.xlu0 %139
    %143 = vset.pattern.permute.xlu0 0
    %144 = vperm.xlu0 %143, %v136
    %v145 = vpop.permute.xlu0 %144
    %v147 = vmul.f32 %v140, %v46
    %v148 = vmul.f32 %v145, %v47
    %v149 = vsel %vm56, %v147, 0.0
    %v150 = vrot.slane %v149, 4
    %v151 = vadd.f32 %v149, %v150
    %v152 = vrot.slane %v151, 2
    %v153 = vadd.f32 %v151, %v152
    %v154 = vrot.slane %v153, 1
    %v155 = vadd.f32 %v153, %v154
    %v156 = vsel %vm56, %v148, 0.0
    %v157 = vrot.slane %v156, 4
    %v158 = vadd.f32 %v156, %v157
    %v159 = vrot.slane %v158, 2
    %v160 = vadd.f32 %v158, %v159
    %v161 = vrot.slane %v160, 1
    %v162 = vadd.f32 %v160, %v161
    %v163 = vperm.slane %v140, %v66
    %v164 = vperm.slane %v145, %v66
    %v165 = vsel %vm69, %v164, %v163
    %167 = vst.msk [vmem:[#allocation7] sm:$0x3] %vm72, %v165
    %v170 = vsel %vm69, %v162, %v155
    %vm172 = vcmask 254976
    %173 = vst.msk [vmem:[#allocation8] sm:$0x3] %vm172, %v170
    // Predicated region
    $region18: #{attn_step.1} parent=1 // pred_check
      _
    $region19: #{attn_step.1} parent=1 // pred_check_branch
      %175 = sbr.rel (0) target = $region21
    $region20: #{attn_step.1} parent=1 // pred_region
      %177 = vsyncadd [#allocation4], 0
      %s179 = sshll.u32 [#allocation7], 4
      %s180 = int_to_ptr.vmem [resolvable:$true] %s179
      %s181 = sshll.u32 %s2, 4
      %s182 = int_to_ptr.hbm [resolvable:$true] %s181
      %184 = dma.vmem_to_hbm [thread:$0]  %s180, 32, %s182, [#allocation4]
    $region21: #{attn_step.1} parent=1 // pred_fallthru
      _
    // Predicated region
    $region22: #{attn_step.1} parent=1 // pred_check
      _
    $region23: #{attn_step.1} parent=1 // pred_check_branch
      %186 = sbr.rel (0) target = $region25
    $region24: #{attn_step.1} parent=1 // pred_region
      %188 = vsyncadd [#allocation9], 0
      %s190 = sshll.u32 [#allocation8], 4
      %s191 = int_to_ptr.vmem [resolvable:$true] %s190
      %s192 = sshll.u32 %s3, 4
      %s193 = int_to_ptr.hbm [resolvable:$true] %s192
      %195 = dma.vmem_to_hbm [thread:$0]  %s191, 32, %s193, [#allocation9]
    $region25: #{attn_step.1} parent=1 // pred_fallthru
      _
    // Predicated region
    $region26: #{attn_step.1} parent=1 // pred_check
      _
    $region27: #{attn_step.1} parent=1 // pred_check_branch
      %197 = sbr.rel (0) target = $region29
    $region28: #{attn_step.1} parent=1 // pred_region
      %199 = dma.done [#allocation4], 32
    $region29: #{attn_step.1} parent=1 // pred_fallthru
      _
    // Predicated region
    $region30: #{attn_step.1} parent=1 // pred_check
      _
    $region31: #{attn_step.1} parent=1 // pred_check_branch
      %201 = sbr.rel (0) target = $region33
    $region32: #{attn_step.1} parent=1 // pred_region
      %203 = dma.done [#allocation9], 32
    $region33: #{attn_step.1} parent=1 // pred_fallthru
      _
    %204 = vsyncpa [#allocation3], 1
    %205 = vsyncpa [#allocation6], 1
    %206 = vsyncpa [#allocation4], 1
    %207 = vsyncpa [#allocation9], 1

</llo_original>
